<compile_context>
chip_gen: v7x
topology: tpu7x:2x2x1
jax: 0.10.0
libtpu: 0.0.40
codegen_flags: <defaults>
</compile_context>

<pallas_src>
import jax
import jax.numpy as jnp
from jax import lax
from jax.experimental import pallas as pl
from jax.experimental.pallas import tpu as pltpu

LANE = 128


def _tensorcores_per_device():
    """Best-effort count of TensorCores addressable by a single pallas_call."""
    try:
        info = pltpu.get_tpu_info()
        for name in ("num_cores", "num_tensorcores", "tensorcores_per_chip",
                     "cores_per_chip"):
            v = getattr(info, name, None)
            if isinstance(v, int) and 1 <= v <= 8:
                return v
    except Exception:
        pass
    try:
        kind = jax.devices()[0].device_kind.lower()
    except Exception:
        return 1
    # Chips that expose 2 TensorCores behind one device (megacore / v7x).
    if any(tag in kind for tag in ("v7", "v4", "v5p")):
        return 2
    return 1


def discriminator_adversarial_loss(real, fake, *, tile_bytes=4 << 20,
                                   num_cores=None):
    """Pallas equivalent of DiscriminatorAdversarialLoss.forward(real, fake).

    Inputs may be f32/bf16/f16 (same dtype, same shape); accumulation is f32.
    `tile_bytes` is the per-input HBM->VMEM block size per grid step.
    """
    assert real.shape == fake.shape, "real/fake must share a shape"
    assert real.dtype == fake.dtype, "real/fake must share a dtype"
    assert jnp.issubdtype(real.dtype, jnp.floating)
    n = real.size
    assert n > 0

    itemsize = jnp.dtype(real.dtype).itemsize
    r_flat = real.reshape(-1)
    f_flat = fake.reshape(-1)

    rows = n // LANE
    tail = n - rows * LANE
    tail_sum = jnp.float32(0.0)

    if rows == 0:
        # Degenerate (<128 elements): neutral-pad one lane row (tiny copy).
        #   real -> 1  ((1-1)^2 = 0),   fake -> 0  (0^2 = 0).
        r2 = jnp.pad(r_flat, (0, LANE - n), constant_values=1).reshape(1, LANE)
        f2 = jnp.pad(f_flat, (0, LANE - n), constant_values=0).reshape(1, LANE)
        rows, tail = 1, 0
    elif tail:
        # Unaligned element count: kernel runs on the 128-aligned prefix; the
        # <128-element tail is folded in with a trivially small jnp reduction
        # (no full-array pad copy of both inputs).
        rt = lax.slice(r_flat, (rows * LANE,), (n,)).astype(jnp.float32)
        ft = lax.slice(f_flat, (rows * LANE,), (n,)).astype(jnp.float32)
        tail_sum = jnp.sum((rt - 1.0) ** 2 + ft * ft)
        r2 = lax.slice(r_flat, (0,), (rows * LANE,)).reshape(rows, LANE)
        f2 = lax.slice(f_flat, (0,), (rows * LANE,)).reshape(rows, LANE)
    else:
        r2 = r_flat.reshape(rows, LANE)
        f2 = f_flat.reshape(rows, LANE)

    # Dtype-aware tile: constant bytes per step; rows rounded to the sublane
    # packing multiple (8 for f32, 16 for bf16/f16).
    row_mult = 8 * max(1, 4 // itemsize)
    tr = max(row_mult, (tile_bytes // (LANE * itemsize)) // row_mult * row_mult)
    if rows <= tr:
        tr = rows                            # block == full dim is always legal

    blocks_total = pl.cdiv(rows, tr)
    nc = num_cores if num_cores is not None else _tensorcores_per_device()
    nc = max(1, min(nc, blocks_total))       # cores actually used
    bpc = pl.cdiv(blocks_total, nc)          # row blocks per core

    clamp_blocks = (nc * bpc != blocks_total)        # uneven core split
    needs_mask = clamp_blocks or (rows % tr != 0)    # + partial last block

    if clamp_blocks:
        def in_idx(c, j):
            # Duplicate trailing blocks are clamped in-range and fully masked
            # inside the kernel (valid <= 0) so they contribute exactly 0.
            return (jnp.minimum(c * bpc + j, blocks_total - 1), 0)
    else:
        def in_idx(c, j):
            return (c * bpc + j, 0)

    def kernel(real_ref, fake_ref, out_ref, acc_ref):
        c = pl.program_id(0)
        j = pl.program_id(1)

        @pl.when(j == 0)
        def _():
            acc_ref[...] = jnp.zeros_like(acc_ref)

        r = real_ref[...].astype(jnp.float32)
        f = fake_ref[...].astype(jnp.float32)
        d = r - 1.0
        contrib = d * d + f * f                          # (tr, LANE) f32

        if needs_mask:
            block = c * bpc + j                          # logical block index
            valid = rows - block * tr                    # valid rows in block

            @pl.when(valid >= tr)                        # full block: no mask
            def _():
                acc_ref[...] += jnp.sum(contrib, axis=0, keepdims=True)

            @pl.when(valid < tr)                         # partial / duplicate
            def _():
                row_idx = lax.broadcasted_iota(jnp.int32, (tr, LANE), 0)
                # Select (not multiply) so NaN/Inf in Pallas-padded rows is
                # zeroed, never propagated.
                masked = jnp.where(row_idx < valid, contrib, 0.0)
                acc_ref[...] += jnp.sum(masked, axis=0, keepdims=True)
        else:
            acc_ref[...] += jnp.sum(contrib, axis=0, keepdims=True)

        @pl.when(j == pl.num_programs(1) - 1)
        def _():
            # Cross-lane reduce on the XLU (free slot); one scalar per core.
            out_ref[...] = jnp.sum(acc_ref[...]).reshape(1, 1, 1)

    block_bytes = tr * LANE * itemsize
    # 2 inputs x 2 pipeline buffers + slack; never below 16 MiB.
    vmem_limit = max(16 << 20, 4 * block_bytes + (2 << 20))

    partials = pl.pallas_call(
        kernel,
        out_shape=jax.ShapeDtypeStruct((nc, 1, 1), jnp.float32),
        grid_spec=pltpu.PrefetchScalarGridSpec(
            num_scalar_prefetch=0,
            grid=(nc, bpc),
            in_specs=[
                # TODO(synk): sweep pipeline_mode=pl.Buffered(3) on v7x if an
                # xprof trace shows DMA gaps from the two TCs contending on HBM.
                pl.BlockSpec((tr, LANE), in_idx),
                pl.BlockSpec((tr, LANE), in_idx),
            ],
            out_specs=pl.BlockSpec((1, 1, 1), lambda c, j: (c, 0, 0)),
            scratch_shapes=[pltpu.VMEM((1, LANE), jnp.float32)],
        ),
        compiler_params=pltpu.CompilerParams(
            dimension_semantics=("parallel", "arbitrary"),
            vmem_limit_bytes=int(vmem_limit)),
        cost_estimate=pl.CostEstimate(
            flops=6 * n, transcendentals=0,
            bytes_accessed=2 * n * itemsize),
    )(r2, f2)

    # mean((r-1)^2)/2 + mean(f^2)/2 = (sum((r-1)^2) + sum(f^2)) / (2*N)
    return (jnp.sum(partials) + tail_sum) / (2.0 * n)


if __name__ == "__main__":
    key = jax.random.PRNGKey(0)
    k = jax.random.split(key, 10)

    def ref_loss(real, fake):
        r = real.astype(jnp.float32)
        f = fake.astype(jnp.float32)
        return jnp.mean((r - 1.0) ** 2 / 2.0) + jnp.mean(f ** 2 / 2.0)

    # Case 1: small NCHW discriminator maps, f32, default tile (single block).
    real = jax.random.normal(k[0], (2, 4, 16, 16), dtype=jnp.float32)
    fake = jax.random.normal(k[1], (2, 4, 16, 16), dtype=jnp.float32)
    got = jax.block_until_ready(discriminator_adversarial_loss(real, fake))
    want = ref_loss(real, fake)
    assert jnp.allclose(got, want, rtol=1e-5, atol=1e-6), (got, want)

    # Case 2: f32, tiny tile + forced 2-way split -> exercises the gated
    # row-tail mask (rows=24, tr=16, even split, partial last block).
    real = jax.random.normal(k[2], (2, 4, 24, 16), dtype=jnp.float32)
    fake = jax.random.normal(k[3], (2, 4, 24, 16), dtype=jnp.float32)
    got = jax.block_until_ready(discriminator_adversarial_loss(
        real, fake, tile_bytes=16 * LANE * 4, num_cores=2))
    want = ref_loss(real, fake)
    assert jnp.allclose(got, want, rtol=1e-5, atol=1e-6), (got, want)

    # Case 3: native bf16, odd block count + forced 2-way split -> exercises
    # the clamped duplicate block (must contribute exactly 0).
    real = jax.random.normal(k[4], (3, 2, 32, 32), dtype=jnp.float32).astype(jnp.bfloat16)
    fake = jax.random.normal(k[5], (3, 2, 32, 32), dtype=jnp.float32).astype(jnp.bfloat16)
    got = jax.block_until_ready(discriminator_adversarial_loss(
        real, fake, tile_bytes=16 * LANE * 2, num_cores=2))
    want = ref_loss(real, fake)
    assert jnp.allclose(got, want, rtol=1e-5, atol=1e-5), (got, want)

    # Case 4: element count not a multiple of 128 -> aligned prefix in the
    # kernel + tiny jnp tail reduction in the wrapper.
    real = jax.random.normal(k[6], (3, 5, 7, 11), dtype=jnp.float32)
    fake = jax.random.normal(k[7], (3, 5, 7, 11), dtype=jnp.float32)
    got = jax.block_until_ready(discriminator_adversarial_loss(real, fake))
    want = ref_loss(real, fake)
    assert jnp.allclose(got, want, rtol=1e-5, atol=1e-6), (got, want)

    # Case 5: fewer than 128 elements total -> degenerate neutral-pad path.
    real = jax.random.normal(k[8], (4, 20), dtype=jnp.float32)
    fake = jax.random.normal(k[9], (4, 20), dtype=jnp.float32)
    got = jax.block_until_ready(discriminator_adversarial_loss(real, fake))
    want = ref_loss(real, fake)
    assert jnp.allclose(got, want, rtol=1e-5, atol=1e-6), (got, want)

    print("KERNEL_OK")
</pallas_src>

<mosaic_0001>
module attributes {stable_mosaic.version = 11 : i64} {
  func.func @kernel(%arg0: i32, %arg1: i32, %arg2: memref<16x128xf32, #tpu.memory_space<vmem>>, %arg3: memref<16x128xf32, #tpu.memory_space<vmem>>, %arg4: memref<1x1x1xf32, #tpu.memory_space<vmem>>, %arg5: memref<1x128xf32, #tpu.memory_space<vmem>>) attributes {dimension_semantics = [#tpu.dimension_semantics<parallel>, #tpu.dimension_semantics<arbitrary>], iteration_bounds = array<i64: 1, 1>, scalar_prefetch = 0 : i64, scratch_operands = 1 : i64, tpu.core_type = #tpu.core_type<tc>, window_params = [{transform_indices = @transform_0, window_bounds = array<i64: 16, 128>}, {transform_indices = @transform_1, window_bounds = array<i64: 16, 128>}, {transform_indices = @transform_2, window_bounds = array<i64: 1, 1, 1>}]} {
    %c0_i32 = arith.constant 0 : i32
    %0 = arith.cmpi eq, %arg1, %c0_i32 : i32
    %1 = arith.extui %0 : i1 to i32
    %c0_i32_0 = arith.constant 0 : i32
    %2 = arith.cmpi ne, %1, %c0_i32_0 : i32
    scf.if %2 {
      %cst_11 = arith.constant 0.000000e+00 : f32
      %18 = vector.broadcast %cst_11 : f32 to vector<1x128xf32>
      %c0_12 = arith.constant 0 : index
      %c0_13 = arith.constant 0 : index
      %19 = vector.load %arg5[%c0_12, %c0_13] : memref<1x128xf32, #tpu.memory_space<vmem>>, vector<1x128xf32>
      tpu.vector_store %arg5[%c0_12, %c0_13], %18 {strides = array<i32>} : memref<1x128xf32, #tpu.memory_space<vmem>>, vector<1x128xf32>,
    } else {
    }
    %c0 = arith.constant 0 : index
    %c0_1 = arith.constant 0 : index
    %3 = vector.load %arg2[%c0, %c0_1] : memref<16x128xf32, #tpu.memory_space<vmem>>, vector<16x128xf32>
    %c0_2 = arith.constant 0 : index
    %c0_3 = arith.constant 0 : index
    %4 = vector.load %arg3[%c0_2, %c0_3] : memref<16x128xf32, #tpu.memory_space<vmem>>, vector<16x128xf32>
    %cst = arith.constant 1.000000e+00 : f32
    %5 = vector.broadcast %cst : f32 to vector<16x128xf32>
    %6 = arith.subf %3, %5 : vector<16x128xf32>
    %7 = arith.mulf %6, %6 : vector<16x128xf32>
    %8 = arith.mulf %4, %4 : vector<16x128xf32>
    %9 = arith.addf %7, %8 : vector<16x128xf32>
    %c0_4 = arith.constant 0 : index
    %c0_5 = arith.constant 0 : index
    %10 = vector.load %arg5[%c0_4, %c0_5] : memref<1x128xf32, #tpu.memory_space<vmem>>, vector<1x128xf32>
    %cst_6 = arith.constant dense<0.000000e+00> : vector<128xf32>
    %11 = vector.multi_reduction <add>, %9, %cst_6 [0] : vector<16x128xf32> to vector<128xf32>
    %12 = vector.shape_cast %11 : vector<128xf32> to vector<1x128xf32>
    %13 = arith.addf %10, %12 : vector<1x128xf32>
    %c0_7 = arith.constant 0 : index
    %c0_8 = arith.constant 0 : index
    %14 = vector.load %arg5[%c0_7, %c0_8] : memref<1x128xf32, #tpu.memory_space<vmem>>, vector<1x128xf32>
    tpu.vector_store %arg5[%c0_7, %c0_8], %13 {strides = array<i32>} : memref<1x128xf32, #tpu.memory_space<vmem>>, vector<1x128xf32>,
    %c0_i32_9 = arith.constant 0 : i32
    %15 = arith.cmpi eq, %arg1, %c0_i32_9 : i32
    %16 = arith.extui %15 : i1 to i32
    %c0_i32_10 = arith.constant 0 : i32
    %17 = arith.cmpi ne, %16, %c0_i32_10 : i32
    scf.if %17 {
      %c0_11 = arith.constant 0 : index
      %c0_12 = arith.constant 0 : index
      %18 = vector.load %arg5[%c0_11, %c0_12] : memref<1x128xf32, #tpu.memory_space<vmem>>, vector<1x128xf32>
      %19 = vector.shape_cast %18 : vector<1x128xf32> to vector<1x1x128xf32>
      %cst_13 = arith.constant dense<0.000000e+00> : vector<1xf32>
      %20 = vector.multi_reduction <add>, %19, %cst_13 [1, 2] : vector<1x1x128xf32> to vector<1xf32>
      %21 = vector.shape_cast %20 : vector<1xf32> to vector<1x1x1xf32>
      %22 = vector.extract %21[0, 0, 0] : f32 from vector<1x1x1xf32>
      %23 = vector.broadcast %22 : f32 to vector<1x1x1xf32>
      %c0_14 = arith.constant 0 : index
      %c0_15 = arith.constant 0 : index
      %c0_16 = arith.constant 0 : index
      %24 = vector.load %arg4[%c0_14, %c0_15, %c0_16] : memref<1x1x1xf32, #tpu.memory_space<vmem>>, vector<1x1x1xf32>
      tpu.vector_store %arg4[%c0_14, %c0_15, %c0_16], %23 {strides = array<i32>} : memref<1x1x1xf32, #tpu.memory_space<vmem>>, vector<1x1x1xf32>,
    } else {
    }
    return
  }
  func.func @transform_0(%arg0: i32, %arg1: i32) -> (i32, i32) {
    %c1_i32 = arith.constant 1 : i32
    %0 = arith.muli %arg0, %c1_i32 : i32
    %1 = arith.addi %0, %arg1 : i32
    %c0_i32 = arith.constant 0 : i32
    %c0_i32_0 = arith.constant 0 : i32
    return %1, %c0_i32 : i32, i32
  }
  func.func @transform_1(%arg0: i32, %arg1: i32) -> (i32, i32) {
    %c1_i32 = arith.constant 1 : i32
    %0 = arith.muli %arg0, %c1_i32 : i32
    %1 = arith.addi %0, %arg1 : i32
    %c0_i32 = arith.constant 0 : i32
    %c0_i32_0 = arith.constant 0 : i32
    return %1, %c0_i32 : i32, i32
  }
  func.func @transform_2(%arg0: i32, %arg1: i32) -> (i32, i32, i32) {
    %c0_i32 = arith.constant 0 : i32
    %c0_i32_0 = arith.constant 0 : i32
    %c0_i32_1 = arith.constant 0 : i32
    return %arg0, %c0_i32, %c0_i32_0 : i32, i32, i32
  }
}

</mosaic_0001>

<llo_original>
// kernel: tpu_custom_call.1
$region0: #{tpu_custom_call.1}
  #allocation0 [shape = 'u32[]', space=smem, size = 0x4, offset = 0x4, fixed_abs, tag = 'smem constant byte address 0x4 - core index']
  #allocation1 [shape = 'u32[144,128]{1,0:T(1,128)}', space=vmem, size = 0x12000, scoped, tag = 'internal scratch']
  #allocation2 [shape = 'f32[1,128]{1,0:T(1,128)}', space=vmem, size = 0x200, scoped, tag = 'scratch operand']
  %s0 = inlined_call_operand.hbm [shape: f32[16,128], index: 0, kind: input, shape index: {}]
  %s1 = inlined_call_operand.hbm [shape: f32[16,128], index: 1, kind: input, shape index: {}]
  %s2 = inlined_call_operand.hbm [shape: f32[1,1,1], index: 2, kind: output, shape index: {}]
  %s3 = sld [smem:[#allocation0]]
  $region34: #{tpu_custom_call.1} parent=0
    _
  %s5 = ssub.s32 1, %s3
  %s6 = scalar_select 0, %s5, %s3
  $region1: #{tpu_custom_call.1} parent=0
    #allocation3 [shape = 'u8[8192]{0}', space=vmem, size = 0x2000, scoped, tag = 'input window, operand 0, single buffered']
    #allocation4 [shape = 's32[1]{0}', space=sflag, size = 0x4, scoped, tag = 'scoped memory for tpu_custom_call.1']
    #allocation5 [shape = 's32[1]{0}', space=sflag, size = 0x4, scoped, tag = 'scoped memory for tpu_custom_call.1']
    #allocation6 [shape = 'u8[8192]{0}', space=vmem, size = 0x2000, scoped, tag = 'input window, operand 1, single buffered']
    #allocation7 [shape = 's32[1]{0}', space=sflag, size = 0x4, scoped, tag = 'scoped memory for tpu_custom_call.1']
    #allocation8 [shape = 'u8[512]{0}', space=vmem, size = 0x400, scoped, tag = 'output window, operand 0, single buffered']
    %7 = vsyncpa [#allocation4], 0
    %8 = vsyncpa [#allocation7], 0
    %9 = vsyncpa [#allocation5], 0
    // Predicated region
    $region2: #{tpu_custom_call.1} parent=1 // pred_check
      _
    $region3: #{tpu_custom_call.1} parent=1 // pred_check_branch
      %11 = sbr.rel (0) target = $region5
    $region4: #{tpu_custom_call.1} parent=1 // pred_region
      %s12 = sadd.s32 0, 0
      %s13 = smul.u32 2, %s12
      %s15 = ssub.s32 256, 256
      %16 = vsyncadd [#allocation4], %s15
      %s17 = smul.addr %s13, 128
      %s18 = scalar_lea.hbm %s0, %s17
      %s19 = sshll.u32 [#allocation3], 4
      %s20 = int_to_ptr.vmem [resolvable:$true] %s19
      %25 = dma.hbm_to_vmem [thread:$0]  %s18, 256, %s20, [#allocation4], 128, 128, 8
    $region5: #{tpu_custom_call.1} parent=1 // pred_fallthru
      _
    // Predicated region
    $region6: #{tpu_custom_call.1} parent=1 // pred_check
      _
    $region7: #{tpu_custom_call.1} parent=1 // pred_check_branch
      %27 = sbr.rel (0) target = $region9
    $region8: #{tpu_custom_call.1} parent=1 // pred_region
      %s28 = sadd.s32 0, 0
      %s29 = smul.u32 2, %s28
      %s31 = ssub.s32 256, 256
      %32 = vsyncadd [#allocation7], %s31
      %s33 = smul.addr %s29, 128
      %s34 = scalar_lea.hbm %s1, %s33
      %s35 = sshll.u32 [#allocation6], 4
      %s36 = int_to_ptr.vmem [resolvable:$true] %s35
      %41 = dma.hbm_to_vmem [thread:$0]  %s34, 256, %s36, [#allocation7], 128, 128, 8
    $region9: #{tpu_custom_call.1} parent=1 // pred_fallthru
      _
    // Predicated region
    $region10: #{tpu_custom_call.1} parent=1 // pred_check
      _
    $region11: #{tpu_custom_call.1} parent=1 // pred_check_branch
      %43 = sbr.rel (0) target = $region13
    $region12: #{tpu_custom_call.1} parent=1 // pred_region
      %44 = dma.done [#allocation4], 256
    $region13: #{tpu_custom_call.1} parent=1 // pred_fallthru
      _
    // Predicated region
    $region14: #{tpu_custom_call.1} parent=1 // pred_check
      _
    $region15: #{tpu_custom_call.1} parent=1 // pred_check_branch
      %46 = sbr.rel (0) target = $region17
    $region16: #{tpu_custom_call.1} parent=1 // pred_region
      %47 = dma.done [#allocation7], 256
    $region17: #{tpu_custom_call.1} parent=1 // pred_fallthru
      _
    %s48 = sadd.s32 0, 0
    %s49 = smul.u32 2, %s48
    %s50 = sadd.s32 0, 0
    %s51 = smul.u32 2, %s50
    %p52 = scmp.eq.s32.totalorder 0, 0
    // Predicated region
    $region18: #{tpu_custom_call.1} parent=1 // pred_check
      %p53 = pneg %p52
    $region19: #{tpu_custom_call.1} parent=1 // pred_check_branch
      %55 = sbr.rel (%p53) target = $region21
    $region20: #{tpu_custom_call.1} parent=1 // pred_region
      %56 = vst [vmem:[#allocation2] sm:$0x1] 0.0
    $region21: #{tpu_custom_call.1} parent=1 // pred_fallthru
      _
    %v57 = vld [vmem:[#allocation3] sm:$0xff]
    %v58 = vld [vmem:[#allocation3 + $0x8] sm:$0xff]
    %v59 = vld [vmem:[#allocation6] sm:$0xff]
    %v60 = vld [vmem:[#allocation6 + $0x8] sm:$0xff]
    %v61 = vsub.f32 %v57, 1.0
    %v62 = vsub.f32 %v58, 1.0
    %v63 = vmul.f32 %v61, %v61
    %v64 = vmul.f32 %v62, %v62
    %v65 = vmul.f32 %v59, %v59
    %v66 = vmul.f32 %v60, %v60
    %v67 = vadd.f32 %v63, %v65
    %v68 = vadd.f32 %v64, %v66
    %v69 = vld [vmem:[#allocation2] sm:$0x1]
    %v70 = vadd.f32 %v67, %v68
    %v71 = vrot.slane %v70, 4
    %v72 = vadd.f32 %v70, %v71
    %v73 = vrot.slane %v72, 2
    %v74 = vadd.f32 %v72, %v73
    %v75 = vrot.slane %v74, 1
    %v76 = vadd.f32 %v74, %v75
    %v77 = vadd.f32 %v69, %v76
    %78 = vst [vmem:[#allocation2] sm:$0x1] %v77
    // Predicated region
    $region22: #{tpu_custom_call.1} parent=1 // pred_check
      %p79 = pneg %p52
    $region23: #{tpu_custom_call.1} parent=1 // pred_check_branch
      %81 = sbr.rel (%p79) target = $region25
    $region24: #{tpu_custom_call.1} parent=1 // pred_region
      %v82 = vld [vmem:[#allocation2] sm:$0x1]
      %vm83 = vcmask 1040384
      %v84 = vsel %vm83, %v82, 0.0
      %85 = vadd.xlane.f32.xlu0 %v84
      %v86 = vpop.xlane.xlu0 %85
      %v87 = vrot.slane %v86, 4
      %v88 = vadd.f32 %v86, %v87
      %v89 = vrot.slane %v88, 2
      %v90 = vadd.f32 %v88, %v89
      %v91 = vrot.slane %v90, 1
      %v92 = vadd.f32 %v90, %v91
      %s93 = vtos %v92
      %v94 = vstv %s93
      %vm95 = vcmask 0
      %96 = vst.msk [vmem:[#allocation8] sm:$0x1] %vm95, %v94
    $region25: #{tpu_custom_call.1} parent=1 // pred_fallthru
      _
    // Predicated region
    $region26: #{tpu_custom_call.1} parent=1 // pred_check
      _
    $region27: #{tpu_custom_call.1} parent=1 // pred_check_branch
      %98 = sbr.rel (0) target = $region29
    $region28: #{tpu_custom_call.1} parent=1 // pred_region
      %s100 = ssub.s32 16, 16
      %101 = vsyncadd [#allocation5], %s100
      %s103 = sshll.u32 [#allocation8], 4
      %s104 = int_to_ptr.vmem [resolvable:$true] %s103
      %106 = dma.vmem_to_hbm [thread:$0]  %s104, 16, %s2, [#allocation5]
    $region29: #{tpu_custom_call.1} parent=1 // pred_fallthru
      _
    // Predicated region
    $region30: #{tpu_custom_call.1} parent=1 // pred_check
      _
    $region31: #{tpu_custom_call.1} parent=1 // pred_check_branch
      %108 = sbr.rel (0) target = $region33
    $region32: #{tpu_custom_call.1} parent=1 // pred_region
      %109 = dma.done [#allocation5], 16
    $region33: #{tpu_custom_call.1} parent=1 // pred_fallthru
      _
    %110 = vsyncpa [#allocation4], 1
    %111 = vsyncpa [#allocation7], 1
    %112 = vsyncpa [#allocation5], 1

</llo_original>
